<compile_context>
chip_gen: v7x
topology: tpu7x:2x2x1
jax: 0.10.0
libtpu: 0.0.40
codegen_flags: <defaults>
</compile_context>

<pallas_src>
import functools

import jax
import jax.numpy as jnp
import numpy as np
from jax.experimental import pallas as pl
from jax.experimental.pallas import tpu as pltpu


# Order of the grid-invariant bf16 weight tensors passed to the kernel.
_WEIGHT_ORDER = (
    "rb1_fc1_wz", "rb1_fc1_wb",
    "rb1_fc2_w",
    "rb1_fc3_wz", "rb1_fc3_wb",
    "rb2_fc1_wz", "rb2_fc1_wb", "rb2_fc1_wx",
    "rb2_fc2_w",
    "rb2_fc3_wz", "rb2_fc3_wb", "rb2_fc3_wx",
    "head_w",
)


def _round_up(x, m):
  return (x + m - 1) // m * m


# ----------------------------------------------------------------------------
# Wrapper + kernel: batch grid, single-buffered VMEM-resident weights,
# packed biases, lane-dense fused output head.
# ----------------------------------------------------------------------------
@functools.partial(jax.jit, static_argnames=("n_joints",))
def dexgan_forward(Zin, bps_object, params, *, n_joints):
  """DexGANGrasp.forward(Zin, bps_object) -> generator results dict."""
  B, latent_d = Zin.shape
  in_bps = bps_object.shape[1]
  hidden = params["rb1_fc1_wz"].shape[1]
  n_neurons = params["rb1_fc2_w"].shape[1]
  n_out_pad = params["head_w"].shape[1]   # padded to a multiple of 128 lanes
  n_out = n_joints + 9                    # [n_joints | 6 | 3]

  # Batch tile: multiple of 16 (bf16 sublane packing), capped at 128 (MXU M),
  # sized so the grid has >= 2 steps once B is large (megacore on v7x).
  tm = max(16, min(128, _round_up((B + 1) // 2, 16)))
  b_pad = _round_up(B, tm)

  z = Zin.astype(jnp.bfloat16)
  bps = bps_object.astype(jnp.bfloat16)
  if b_pad != B:
    z = jnp.pad(z, ((0, b_pad - B), (0, 0)))
    bps = jnp.pad(bps, ((0, b_pad - B), (0, 0)))

  weight_args = [params[k] for k in _WEIGHT_ORDER] + [params["bias_slab"]]

  def kernel(z_ref, bps_ref,
             rb1_fc1_wz, rb1_fc1_wb, rb1_fc2_w, rb1_fc3_wz, rb1_fc3_wb,
             rb2_fc1_wz, rb2_fc1_wb, rb2_fc1_wx, rb2_fc2_w,
             rb2_fc3_wz, rb2_fc3_wb, rb2_fc3_wx,
             head_w, bias_ref, out_ref):
    lrelu = lambda v: jnp.maximum(v, 0.2 * v)          # LeakyReLU(0.2)
    bf16 = jnp.bfloat16
    dot = lambda a, w_ref: jnp.dot(a, w_ref[...],
                                   preferred_element_type=jnp.float32)

    # Packed biases: one resident (7, Wmax) f32 slab, static row/lane slices.
    bias = bias_ref[...]
    b_rb1_fc1 = bias[0:1, :hidden]
    b_rb1_fc2 = bias[1:2, :n_neurons]
    b_rb1_fc3 = bias[2:3, :n_neurons]
    b_rb2_fc1 = bias[3:4, :hidden]
    b_rb2_fc2 = bias[4:5, :n_neurons]
    b_rb2_fc3 = bias[5:6, :n_neurons]
    b_head = bias[6:7, :n_out_pad]

    zb = z_ref[...]        # (TM, latentD), already bf16
    bpsb = bps_ref[...]    # (TM, in_bps), already bf16

    # --- gen_rb1 (Fin != Fout): shortcut = lrelu(fc3(X0))
    xin = lrelu(dot(zb, rb1_fc3_wz) + dot(bpsb, rb1_fc3_wb) + b_rb1_fc3)
    h = lrelu(dot(zb, rb1_fc1_wz) + dot(bpsb, rb1_fc1_wb) + b_rb1_fc1)
    h = dot(h.astype(bf16), rb1_fc2_w) + b_rb1_fc2
    x = lrelu(xin + h)
    xb = x.astype(bf16)

    # --- gen_rb2: input is cat([X0, X]) -> split-weight partial matmuls
    xin2 = lrelu(dot(zb, rb2_fc3_wz) + dot(bpsb, rb2_fc3_wb)
                 + dot(xb, rb2_fc3_wx) + b_rb2_fc3)
    h = lrelu(dot(zb, rb2_fc1_wz) + dot(bpsb, rb2_fc1_wb)
              + dot(xb, rb2_fc1_wx) + b_rb2_fc1)
    h = dot(h.astype(bf16), rb2_fc2_w) + b_rb2_fc2
    x = lrelu(xin2 + h)

    # --- fused, lane-dense heads: one MXU pass + one unmasked store
    out_ref[...] = dot(x.astype(bf16), head_w) + b_head

  def batch_spec(feat):
    return pl.BlockSpec((tm, feat), lambda i: (i, 0))

  def resident_spec(shape):
    # Grid-invariant parameter: constant block index + single buffering, so it
    # is fetched from HBM exactly once and holds one VMEM copy (not two).
    return pl.BlockSpec(shape, lambda i: (0, 0),
                        pipeline_mode=pl.Buffered(1))

  in_specs = ([batch_spec(latent_d), batch_spec(in_bps)]
              + [resident_spec(w.shape) for w in weight_args])

  # VMEM budget: single-buffered weights + double-buffered activation tiles +
  # headroom for Mosaic scratch / tile padding; capped well below v7x's
  # 64 MiB physical per-TC VMEM.
  def nbytes(a):
    return int(np.prod(a.shape)) * a.dtype.itemsize

  weight_bytes = sum(nbytes(w) for w in weight_args)
  act_bytes = 2 * tm * (latent_d + in_bps) * 2 + 2 * tm * n_out_pad * 4
  vmem_limit = min(48 * 1024 * 1024,
                   max(16 * 1024 * 1024,
                       weight_bytes + act_bytes + 8 * 1024 * 1024))

  out = pl.pallas_call(
      kernel,
      grid=(b_pad // tm,),
      in_specs=in_specs,
      out_specs=pl.BlockSpec((tm, n_out_pad), lambda i: (i, 0)),
      out_shape=jax.ShapeDtypeStruct((b_pad, n_out_pad), jnp.float32),
      compiler_params=pltpu.CompilerParams(
          dimension_semantics=("parallel",),
          vmem_limit_bytes=vmem_limit),
  )(z, bps, *weight_args)

  out = out[:B, :n_out]
  joint_conf = out[:, :n_joints]
  rot_6d = out[:, n_joints:n_joints + 6]
  transl = out[:, n_joints + 6:n_joints + 9]
  return {"rot_6D": rot_6d, "transl": transl,
          "joint_conf": joint_conf, "z": Zin}


# ----------------------------------------------------------------------------
# Deterministic synthetic PyTorch-style parameters.
# ----------------------------------------------------------------------------
def make_raw_params(key, latent_d, in_bps, n_neurons, hidden, n_joints):
  keys = iter(jax.random.split(key, 64))

  def w(shape, scale=0.05):
    return scale * jax.random.normal(next(keys), shape, jnp.float32)

  def b(n, scale=0.02):
    return scale * jax.random.normal(next(keys), (n,), jnp.float32)

  def lin(fin, fout):
    # stored as (in_features, out_features), i.e. transpose of nn.Linear.weight
    return {"w": w((fin, fout)), "b": b(fout)}

  def bn(n):
    return {
        "gamma": 1.0 + 0.1 * jax.random.normal(next(keys), (n,), jnp.float32),
        "beta": 0.1 * jax.random.normal(next(keys), (n,), jnp.float32),
        "mean": 0.1 * jax.random.normal(next(keys), (n,), jnp.float32),
        "var": 1.0 + 0.5 * jax.random.uniform(next(keys), (n,), jnp.float32),
    }

  fin1 = latent_d + in_bps
  return {
      "gen_bn1": bn(in_bps),
      "rb1": {"fc1": lin(fin1, hidden), "bn1": bn(hidden),
              "fc2": lin(hidden, n_neurons), "bn2": bn(n_neurons),
              "fc3": lin(fin1, n_neurons)},
      "rb2": {"fc1": lin(fin1 + n_neurons, hidden), "bn1": bn(hidden),
              "fc2": lin(hidden, n_neurons), "bn2": bn(n_neurons),
              "fc3": lin(fin1 + n_neurons, n_neurons)},
      "jc": lin(n_neurons, n_joints),
      "rot": lin(n_neurons, 6),
      "tr": lin(n_neurons, 3),
  }


# ----------------------------------------------------------------------------
# Offline folding into the kernel layout: eval-mode BN folded into Linears,
# X0 weights split (Zin / bps / X parts), heads fused + lane-padded, biases
# packed into one f32 slab, weights cast to bf16.
# ----------------------------------------------------------------------------
def fold_params(raw, latent_d, in_bps, weight_dtype=jnp.bfloat16):
  eps = 1e-5

  def affine(p):
    s = p["gamma"] / jnp.sqrt(p["var"] + eps)
    return s, p["beta"] - p["mean"] * s

  s0, t0 = affine(raw["gen_bn1"])  # gen_bn1 over the bps slice of X0

  def split_x0(w, b):
    # input layout of w rows: [Zin(latent_d) | BN(bps)(in_bps) | optional X]
    wz = w[:latent_d]
    wb = w[latent_d:latent_d + in_bps]
    wx = w[latent_d + in_bps:]
    # (bps*s0 + t0) @ wb == bps @ (s0[:,None]*wb) + t0 @ wb
    return wz, s0[:, None] * wb, wx, b + t0 @ wb

  def fold_block(blk, with_x):
    s1, t1 = affine(blk["bn1"])
    s2, t2 = affine(blk["bn2"])
    wz1, wb1, wx1, b1 = split_x0(blk["fc1"]["w"], blk["fc1"]["b"])
    wz3, wb3, wx3, b3 = split_x0(blk["fc3"]["w"], blk["fc3"]["b"])
    out = {
        "fc1_wz": wz1 * s1, "fc1_wb": wb1 * s1, "fc1_b": b1 * s1 + t1,
        "fc2_w": blk["fc2"]["w"] * s2, "fc2_b": blk["fc2"]["b"] * s2 + t2,
        "fc3_wz": wz3, "fc3_wb": wb3, "fc3_b": b3,
    }
    if with_x:
      out["fc1_wx"] = wx1 * s1
      out["fc3_wx"] = wx3
    return out

  rb1 = fold_block(raw["rb1"], with_x=False)
  rb2 = fold_block(raw["rb2"], with_x=True)

  # Fused heads, zero-padded to a multiple of 128 output lanes.
  head_w = jnp.concatenate(
      [raw["jc"]["w"], raw["rot"]["w"], raw["tr"]["w"]], axis=1)
  head_b = jnp.concatenate(
      [raw["jc"]["b"], raw["rot"]["b"], raw["tr"]["b"]], axis=0)
  n_out = head_w.shape[1]
  n_out_pad = _round_up(n_out, 128)
  head_w = jnp.pad(head_w, ((0, 0), (0, n_out_pad - n_out)))
  head_b = jnp.pad(head_b, ((0, n_out_pad - n_out),))

  hidden = rb1["fc1_wz"].shape[1]
  n_neurons = rb1["fc2_w"].shape[1]
  wmax = max(hidden, n_neurons, n_out_pad)

  def row(v):
    v = v.astype(jnp.float32)
    return jnp.pad(v, ((0, wmax - v.shape[0]),))

  bias_slab = jnp.stack(
      [row(rb1["fc1_b"]), row(rb1["fc2_b"]), row(rb1["fc3_b"]),
       row(rb2["fc1_b"]), row(rb2["fc2_b"]), row(rb2["fc3_b"]),
       row(head_b)], axis=0)  # (7, Wmax) f32

  W = lambda a: a.astype(weight_dtype)  # weights -> bf16
  return {
      "rb1_fc1_wz": W(rb1["fc1_wz"]), "rb1_fc1_wb": W(rb1["fc1_wb"]),
      "rb1_fc2_w": W(rb1["fc2_w"]),
      "rb1_fc3_wz": W(rb1["fc3_wz"]), "rb1_fc3_wb": W(rb1["fc3_wb"]),
      "rb2_fc1_wz": W(rb2["fc1_wz"]), "rb2_fc1_wb": W(rb2["fc1_wb"]),
      "rb2_fc1_wx": W(rb2["fc1_wx"]),
      "rb2_fc2_w": W(rb2["fc2_w"]),
      "rb2_fc3_wz": W(rb2["fc3_wz"]), "rb2_fc3_wb": W(rb2["fc3_wb"]),
      "rb2_fc3_wx": W(rb2["fc3_wx"]),
      "head_w": W(head_w),
      "bias_slab": bias_slab,
  }


# ----------------------------------------------------------------------------
# Pure-JAX f32 reference with the ORIGINAL (unfolded) parameters — mirrors the
# PyTorch module math exactly (eval-mode BN, torch.cat, LeakyReLU(0.2)).
# ----------------------------------------------------------------------------
def reference_forward(Zin, bps_object, raw):
  lrelu = lambda v: jnp.maximum(v, 0.2 * v)

  def bn(x, p):
    return (x - p["mean"]) / jnp.sqrt(p["var"] + 1e-5) * p["gamma"] + p["beta"]

  def lin(x, p):
    return x @ p["w"] + p["b"]

  def resblock(x, p):
    xin = lrelu(lin(x, p["fc3"]))           # Fin != Fout in both blocks
    h = lrelu(bn(lin(x, p["fc1"]), p["bn1"]))
    h = bn(lin(h, p["fc2"]), p["bn2"])
    return lrelu(xin + h)

  o_bps = bn(bps_object, raw["gen_bn1"])
  x0 = jnp.concatenate([Zin, o_bps], axis=1)
  x = resblock(x0, raw["rb1"])
  x = resblock(jnp.concatenate([x0, x], axis=1), raw["rb2"])
  return {"joint_conf": lin(x, raw["jc"]), "rot_6D": lin(x, raw["rot"]),
          "transl": lin(x, raw["tr"]), "z": Zin}


if __name__ == "__main__":
  # Small shapes consistent with the module (production: in_bps=4096,
  # n_neurons=512, hidden=256, latentD~8, n_hand_joints=15).
  B = 2
  LATENT_D = 8
  IN_BPS = 64
  N_NEURONS = 32
  HIDDEN = 16
  N_JOINTS = 15

  key = jax.random.PRNGKey(0)
  k_param, k_z, k_bps = jax.random.split(key, 3)

  raw = make_raw_params(k_param, LATENT_D, IN_BPS, N_NEURONS, HIDDEN, N_JOINTS)
  params = fold_params(raw, LATENT_D, IN_BPS)

  Zin = jax.random.normal(k_z, (B, LATENT_D), dtype=jnp.float32)
  bps = jax.random.uniform(k_bps, (B, IN_BPS), dtype=jnp.float32)

  results = dexgan_forward(Zin, bps, params, n_joints=N_JOINTS)
  jax.block_until_ready(results)

  ref = reference_forward(Zin, bps, raw)
  # bf16 weights + bf16 activations => looser tolerance vs. pure-f32 reference.
  for name in ("rot_6D", "transl", "joint_conf"):
    np.testing.assert_allclose(np.asarray(results[name]),
                               np.asarray(ref[name]),
                               rtol=5e-2, atol=2.5e-2)

  assert results["rot_6D"].shape == (B, 6)
  assert results["transl"].shape == (B, 3)
  assert results["joint_conf"].shape == (B, N_JOINTS)
  assert results["z"].shape == (B, LATENT_D)

  print("KERNEL_OK")
</pallas_src>

<mosaic_0001>
module attributes {stable_mosaic.version = 11 : i64} {
  func.func @kernel(%arg0: i32, %arg1: memref<16x8xbf16, #tpu.memory_space<vmem>>, %arg2: memref<16x64xbf16, #tpu.memory_space<vmem>>, %arg3: memref<8x16xbf16, #tpu.memory_space<vmem>>, %arg4: memref<64x16xbf16, #tpu.memory_space<vmem>>, %arg5: memref<16x32xbf16, #tpu.memory_space<vmem>>, %arg6: memref<8x32xbf16, #tpu.memory_space<vmem>>, %arg7: memref<64x32xbf16, #tpu.memory_space<vmem>>, %arg8: memref<8x16xbf16, #tpu.memory_space<vmem>>, %arg9: memref<64x16xbf16, #tpu.memory_space<vmem>>, %arg10: memref<32x16xbf16, #tpu.memory_space<vmem>>, %arg11: memref<16x32xbf16, #tpu.memory_space<vmem>>, %arg12: memref<8x32xbf16, #tpu.memory_space<vmem>>, %arg13: memref<64x32xbf16, #tpu.memory_space<vmem>>, %arg14: memref<32x32xbf16, #tpu.memory_space<vmem>>, %arg15: memref<32x128xbf16, #tpu.memory_space<vmem>>, %arg16: memref<7x128xf32, #tpu.memory_space<vmem>>, %arg17: memref<16x128xf32, #tpu.memory_space<vmem>>) attributes {dimension_semantics = [#tpu.dimension_semantics<parallel>], iteration_bounds = array<i64: 1>, scalar_prefetch = 0 : i64, scratch_operands = 0 : i64, tpu.core_type = #tpu.core_type<tc>, window_params = [{transform_indices = @transform_0, window_bounds = array<i64: 16, 8>}, {transform_indices = @transform_1, window_bounds = array<i64: 16, 64>}, {pipeline_mode = #tpu.pipeline_mode<synchronous>, transform_indices = @transform_2, window_bounds = array<i64: 8, 16>}, {pipeline_mode = #tpu.pipeline_mode<synchronous>, transform_indices = @transform_3, window_bounds = array<i64: 64, 16>}, {pipeline_mode = #tpu.pipeline_mode<synchronous>, transform_indices = @transform_4, window_bounds = array<i64: 16, 32>}, {pipeline_mode = #tpu.pipeline_mode<synchronous>, transform_indices = @transform_5, window_bounds = array<i64: 8, 32>}, {pipeline_mode = #tpu.pipeline_mode<synchronous>, transform_indices = @transform_6, window_bounds = array<i64: 64, 32>}, {pipeline_mode = #tpu.pipeline_mode<synchronous>, transform_indices = @transform_7, window_bounds = array<i64: 8, 16>}, {pipeline_mode = #tpu.pipeline_mode<synchronous>, transform_indices = @transform_8, window_bounds = array<i64: 64, 16>}, {pipeline_mode = #tpu.pipeline_mode<synchronous>, transform_indices = @transform_9, window_bounds = array<i64: 32, 16>}, {pipeline_mode = #tpu.pipeline_mode<synchronous>, transform_indices = @transform_10, window_bounds = array<i64: 16, 32>}, {pipeline_mode = #tpu.pipeline_mode<synchronous>, transform_indices = @transform_11, window_bounds = array<i64: 8, 32>}, {pipeline_mode = #tpu.pipeline_mode<synchronous>, transform_indices = @transform_12, window_bounds = array<i64: 64, 32>}, {pipeline_mode = #tpu.pipeline_mode<synchronous>, transform_indices = @transform_13, window_bounds = array<i64: 32, 32>}, {pipeline_mode = #tpu.pipeline_mode<synchronous>, transform_indices = @transform_14, window_bounds = array<i64: 32, 128>}, {pipeline_mode = #tpu.pipeline_mode<synchronous>, transform_indices = @transform_15, window_bounds = array<i64: 7, 128>}, {transform_indices = @transform_16, window_bounds = array<i64: 16, 128>}]} {
    %c0 = arith.constant 0 : index
    %c0_0 = arith.constant 0 : index
    %0 = vector.load %arg16[%c0, %c0_0] : memref<7x128xf32, #tpu.memory_space<vmem>>, vector<7x128xf32>
    %1 = vector.extract_strided_slice %0 {offsets = [0, 0], sizes = [1, 16], strides = [1, 1]} : vector<7x128xf32> to vector<1x16xf32>
    %2 = vector.extract_strided_slice %0 {offsets = [1, 0], sizes = [1, 32], strides = [1, 1]} : vector<7x128xf32> to vector<1x32xf32>
    %3 = vector.extract_strided_slice %0 {offsets = [2, 0], sizes = [1, 32], strides = [1, 1]} : vector<7x128xf32> to vector<1x32xf32>
    %4 = vector.extract_strided_slice %0 {offsets = [3, 0], sizes = [1, 16], strides = [1, 1]} : vector<7x128xf32> to vector<1x16xf32>
    %5 = vector.extract_strided_slice %0 {offsets = [4, 0], sizes = [1, 32], strides = [1, 1]} : vector<7x128xf32> to vector<1x32xf32>
    %6 = vector.extract_strided_slice %0 {offsets = [5, 0], sizes = [1, 32], strides = [1, 1]} : vector<7x128xf32> to vector<1x32xf32>
    %7 = vector.extract_strided_slice %0 {offsets = [6, 0], sizes = [1, 128], strides = [1, 1]} : vector<7x128xf32> to vector<1x128xf32>
    %c0_1 = arith.constant 0 : index
    %c0_2 = arith.constant 0 : index
    %8 = vector.load %arg1[%c0_1, %c0_2] : memref<16x8xbf16, #tpu.memory_space<vmem>>, vector<16x8xbf16>
    %c0_3 = arith.constant 0 : index
    %c0_4 = arith.constant 0 : index
    %9 = vector.load %arg2[%c0_3, %c0_4] : memref<16x64xbf16, #tpu.memory_space<vmem>>, vector<16x64xbf16>
    %c0_5 = arith.constant 0 : index
    %c0_6 = arith.constant 0 : index
    %10 = vector.load %arg6[%c0_5, %c0_6] : memref<8x32xbf16, #tpu.memory_space<vmem>>, vector<8x32xbf16>
    %cst = arith.constant dense<0.000000e+00> : vector<16x32xf32>
    %11 = tpu.matmul %8, %10, %cst {dimension_numbers = #tpu.dot_dimension_numbers<[1], [0], [0], [1], [0, 0, 1, 1], [], []>} : vector<16x8xbf16>, vector<8x32xbf16>, vector<16x32xf32> -> vector<16x32xf32>
    %c0_7 = arith.constant 0 : index
    %c0_8 = arith.constant 0 : index
    %12 = vector.load %arg7[%c0_7, %c0_8] : memref<64x32xbf16, #tpu.memory_space<vmem>>, vector<64x32xbf16>
    %cst_9 = arith.constant dense<0.000000e+00> : vector<16x32xf32>
    %13 = tpu.matmul %9, %12, %cst_9 {dimension_numbers = #tpu.dot_dimension_numbers<[1], [0], [0], [1], [0, 0, 1, 1], [], []>} : vector<16x64xbf16>, vector<64x32xbf16>, vector<16x32xf32> -> vector<16x32xf32>
    %14 = arith.addf %11, %13 : vector<16x32xf32>
    %15 = vector.broadcast %3 : vector<1x32xf32> to vector<16x32xf32>
    %16 = arith.addf %14, %15 : vector<16x32xf32>
    %cst_10 = arith.constant 2.000000e-01 : f32
    %17 = vector.broadcast %cst_10 : f32 to vector<16x32xf32>
    %18 = arith.mulf %17, %16 : vector<16x32xf32>
    %19 = arith.maximumf %16, %18 : vector<16x32xf32>
    %c0_11 = arith.constant 0 : index
    %c0_12 = arith.constant 0 : index
    %20 = vector.load %arg3[%c0_11, %c0_12] : memref<8x16xbf16, #tpu.memory_space<vmem>>, vector<8x16xbf16>
    %cst_13 = arith.constant dense<0.000000e+00> : vector<16x16xf32>
    %21 = tpu.matmul %8, %20, %cst_13 {dimension_numbers = #tpu.dot_dimension_numbers<[1], [0], [0], [1], [0, 0, 1, 1], [], []>} : vector<16x8xbf16>, vector<8x16xbf16>, vector<16x16xf32> -> vector<16x16xf32>
    %c0_14 = arith.constant 0 : index
    %c0_15 = arith.constant 0 : index
    %22 = vector.load %arg4[%c0_14, %c0_15] : memref<64x16xbf16, #tpu.memory_space<vmem>>, vector<64x16xbf16>
    %cst_16 = arith.constant dense<0.000000e+00> : vector<16x16xf32>
    %23 = tpu.matmul %9, %22, %cst_16 {dimension_numbers = #tpu.dot_dimension_numbers<[1], [0], [0], [1], [0, 0, 1, 1], [], []>} : vector<16x64xbf16>, vector<64x16xbf16>, vector<16x16xf32> -> vector<16x16xf32>
    %24 = arith.addf %21, %23 : vector<16x16xf32>
    %25 = vector.broadcast %1 : vector<1x16xf32> to vector<16x16xf32>
    %26 = arith.addf %24, %25 : vector<16x16xf32>
    %cst_17 = arith.constant 2.000000e-01 : f32
    %27 = vector.broadcast %cst_17 : f32 to vector<16x16xf32>
    %28 = arith.mulf %27, %26 : vector<16x16xf32>
    %29 = arith.maximumf %26, %28 : vector<16x16xf32>
    %30 = arith.truncf %29 : vector<16x16xf32> to vector<16x16xbf16>
    %c0_18 = arith.constant 0 : index
    %c0_19 = arith.constant 0 : index
    %31 = vector.load %arg5[%c0_18, %c0_19] : memref<16x32xbf16, #tpu.memory_space<vmem>>, vector<16x32xbf16>
    %cst_20 = arith.constant dense<0.000000e+00> : vector<16x32xf32>
    %32 = tpu.matmul %30, %31, %cst_20 {dimension_numbers = #tpu.dot_dimension_numbers<[1], [0], [0], [1], [0, 0, 1, 1], [], []>} : vector<16x16xbf16>, vector<16x32xbf16>, vector<16x32xf32> -> vector<16x32xf32>
    %33 = vector.broadcast %2 : vector<1x32xf32> to vector<16x32xf32>
    %34 = arith.addf %32, %33 : vector<16x32xf32>
    %35 = arith.addf %19, %34 : vector<16x32xf32>
    %cst_21 = arith.constant 2.000000e-01 : f32
    %36 = vector.broadcast %cst_21 : f32 to vector<16x32xf32>
    %37 = arith.mulf %36, %35 : vector<16x32xf32>
    %38 = arith.maximumf %35, %37 : vector<16x32xf32>
    %39 = arith.truncf %38 : vector<16x32xf32> to vector<16x32xbf16>
    %c0_22 = arith.constant 0 : index
    %c0_23 = arith.constant 0 : index
    %40 = vector.load %arg12[%c0_22, %c0_23] : memref<8x32xbf16, #tpu.memory_space<vmem>>, vector<8x32xbf16>
    %cst_24 = arith.constant dense<0.000000e+00> : vector<16x32xf32>
    %41 = tpu.matmul %8, %40, %cst_24 {dimension_numbers = #tpu.dot_dimension_numbers<[1], [0], [0], [1], [0, 0, 1, 1], [], []>} : vector<16x8xbf16>, vector<8x32xbf16>, vector<16x32xf32> -> vector<16x32xf32>
    %c0_25 = arith.constant 0 : index
    %c0_26 = arith.constant 0 : index
    %42 = vector.load %arg13[%c0_25, %c0_26] : memref<64x32xbf16, #tpu.memory_space<vmem>>, vector<64x32xbf16>
    %cst_27 = arith.constant dense<0.000000e+00> : vector<16x32xf32>
    %43 = tpu.matmul %9, %42, %cst_27 {dimension_numbers = #tpu.dot_dimension_numbers<[1], [0], [0], [1], [0, 0, 1, 1], [], []>} : vector<16x64xbf16>, vector<64x32xbf16>, vector<16x32xf32> -> vector<16x32xf32>
    %44 = arith.addf %41, %43 : vector<16x32xf32>
    %c0_28 = arith.constant 0 : index
    %c0_29 = arith.constant 0 : index
    %45 = vector.load %arg14[%c0_28, %c0_29] : memref<32x32xbf16, #tpu.memory_space<vmem>>, vector<32x32xbf16>
    %cst_30 = arith.constant dense<0.000000e+00> : vector<16x32xf32>
    %46 = tpu.matmul %39, %45, %cst_30 {dimension_numbers = #tpu.dot_dimension_numbers<[1], [0], [0], [1], [0, 0, 1, 1], [], []>} : vector<16x32xbf16>, vector<32x32xbf16>, vector<16x32xf32> -> vector<16x32xf32>
    %47 = arith.addf %44, %46 : vector<16x32xf32>
    %48 = vector.broadcast %6 : vector<1x32xf32> to vector<16x32xf32>
    %49 = arith.addf %47, %48 : vector<16x32xf32>
    %cst_31 = arith.constant 2.000000e-01 : f32
    %50 = vector.broadcast %cst_31 : f32 to vector<16x32xf32>
    %51 = arith.mulf %50, %49 : vector<16x32xf32>
    %52 = arith.maximumf %49, %51 : vector<16x32xf32>
    %c0_32 = arith.constant 0 : index
    %c0_33 = arith.constant 0 : index
    %53 = vector.load %arg8[%c0_32, %c0_33] : memref<8x16xbf16, #tpu.memory_space<vmem>>, vector<8x16xbf16>
    %cst_34 = arith.constant dense<0.000000e+00> : vector<16x16xf32>
    %54 = tpu.matmul %8, %53, %cst_34 {dimension_numbers = #tpu.dot_dimension_numbers<[1], [0], [0], [1], [0, 0, 1, 1], [], []>} : vector<16x8xbf16>, vector<8x16xbf16>, vector<16x16xf32> -> vector<16x16xf32>
    %c0_35 = arith.constant 0 : index
    %c0_36 = arith.constant 0 : index
    %55 = vector.load %arg9[%c0_35, %c0_36] : memref<64x16xbf16, #tpu.memory_space<vmem>>, vector<64x16xbf16>
    %cst_37 = arith.constant dense<0.000000e+00> : vector<16x16xf32>
    %56 = tpu.matmul %9, %55, %cst_37 {dimension_numbers = #tpu.dot_dimension_numbers<[1], [0], [0], [1], [0, 0, 1, 1], [], []>} : vector<16x64xbf16>, vector<64x16xbf16>, vector<16x16xf32> -> vector<16x16xf32>
    %57 = arith.addf %54, %56 : vector<16x16xf32>
    %c0_38 = arith.constant 0 : index
    %c0_39 = arith.constant 0 : index
    %58 = vector.load %arg10[%c0_38, %c0_39] : memref<32x16xbf16, #tpu.memory_space<vmem>>, vector<32x16xbf16>
    %cst_40 = arith.constant dense<0.000000e+00> : vector<16x16xf32>
    %59 = tpu.matmul %39, %58, %cst_40 {dimension_numbers = #tpu.dot_dimension_numbers<[1], [0], [0], [1], [0, 0, 1, 1], [], []>} : vector<16x32xbf16>, vector<32x16xbf16>, vector<16x16xf32> -> vector<16x16xf32>
    %60 = arith.addf %57, %59 : vector<16x16xf32>
    %61 = vector.broadcast %4 : vector<1x16xf32> to vector<16x16xf32>
    %62 = arith.addf %60, %61 : vector<16x16xf32>
    %cst_41 = arith.constant 2.000000e-01 : f32
    %63 = vector.broadcast %cst_41 : f32 to vector<16x16xf32>
    %64 = arith.mulf %63, %62 : vector<16x16xf32>
    %65 = arith.maximumf %62, %64 : vector<16x16xf32>
    %66 = arith.truncf %65 : vector<16x16xf32> to vector<16x16xbf16>
    %c0_42 = arith.constant 0 : index
    %c0_43 = arith.constant 0 : index
    %67 = vector.load %arg11[%c0_42, %c0_43] : memref<16x32xbf16, #tpu.memory_space<vmem>>, vector<16x32xbf16>
    %cst_44 = arith.constant dense<0.000000e+00> : vector<16x32xf32>
    %68 = tpu.matmul %66, %67, %cst_44 {dimension_numbers = #tpu.dot_dimension_numbers<[1], [0], [0], [1], [0, 0, 1, 1], [], []>} : vector<16x16xbf16>, vector<16x32xbf16>, vector<16x32xf32> -> vector<16x32xf32>
    %69 = vector.broadcast %5 : vector<1x32xf32> to vector<16x32xf32>
    %70 = arith.addf %68, %69 : vector<16x32xf32>
    %71 = arith.addf %52, %70 : vector<16x32xf32>
    %cst_45 = arith.constant 2.000000e-01 : f32
    %72 = vector.broadcast %cst_45 : f32 to vector<16x32xf32>
    %73 = arith.mulf %72, %71 : vector<16x32xf32>
    %74 = arith.maximumf %71, %73 : vector<16x32xf32>
    %75 = arith.truncf %74 : vector<16x32xf32> to vector<16x32xbf16>
    %c0_46 = arith.constant 0 : index
    %c0_47 = arith.constant 0 : index
    %76 = vector.load %arg15[%c0_46, %c0_47] : memref<32x128xbf16, #tpu.memory_space<vmem>>, vector<32x128xbf16>
    %cst_48 = arith.constant dense<0.000000e+00> : vector<16x128xf32>
    %77 = tpu.matmul %75, %76, %cst_48 {dimension_numbers = #tpu.dot_dimension_numbers<[1], [0], [0], [1], [0, 0, 1, 1], [], []>} : vector<16x32xbf16>, vector<32x128xbf16>, vector<16x128xf32> -> vector<16x128xf32>
    %78 = vector.broadcast %7 : vector<1x128xf32> to vector<16x128xf32>
    %79 = arith.addf %77, %78 : vector<16x128xf32>
    %c0_49 = arith.constant 0 : index
    %c0_50 = arith.constant 0 : index
    %80 = vector.load %arg17[%c0_49, %c0_50] : memref<16x128xf32, #tpu.memory_space<vmem>>, vector<16x128xf32>
    tpu.vector_store %arg17[%c0_49, %c0_50], %79 {strides = array<i32>} : memref<16x128xf32, #tpu.memory_space<vmem>>, vector<16x128xf32>,
    return
  }
  func.func @transform_0(%arg0: i32) -> (i32, i32) {
    %c0_i32 = arith.constant 0 : i32
    %c0_i32_0 = arith.constant 0 : i32
    return %arg0, %c0_i32 : i32, i32
  }
  func.func @transform_1(%arg0: i32) -> (i32, i32) {
    %c0_i32 = arith.constant 0 : i32
    %c0_i32_0 = arith.constant 0 : i32
    return %arg0, %c0_i32 : i32, i32
  }
  func.func @transform_2(%arg0: i32) -> (i32, i32) {
    %c0_i32 = arith.constant 0 : i32
    %c0_i32_0 = arith.constant 0 : i32
    %c0_i32_1 = arith.constant 0 : i32
    return %c0_i32, %c0_i32_0 : i32, i32
  }
  func.func @transform_3(%arg0: i32) -> (i32, i32) {
    %c0_i32 = arith.constant 0 : i32
    %c0_i32_0 = arith.constant 0 : i32
    %c0_i32_1 = arith.constant 0 : i32
    return %c0_i32, %c0_i32_0 : i32, i32
  }
  func.func @transform_4(%arg0: i32) -> (i32, i32) {
    %c0_i32 = arith.constant 0 : i32
    %c0_i32_0 = arith.constant 0 : i32
    %c0_i32_1 = arith.constant 0 : i32
    return %c0_i32, %c0_i32_0 : i32, i32
  }
  func.func @transform_5(%arg0: i32) -> (i32, i32) {
    %c0_i32 = arith.constant 0 : i32
    %c0_i32_0 = arith.constant 0 : i32
    %c0_i32_1 = arith.constant 0 : i32
    return %c0_i32, %c0_i32_0 : i32, i32
  }
  func.func @transform_6(%arg0: i32) -> (i32, i32) {
    %c0_i32 = arith.constant 0 : i32
    %c0_i32_0 = arith.constant 0 : i32
    %c0_i32_1 = arith.constant 0 : i32
    return %c0_i32, %c0_i32_0 : i32, i32
  }
  func.func @transform_7(%arg0: i32) -> (i32, i32) {
    %c0_i32 = arith.constant 0 : i32
    %c0_i32_0 = arith.constant 0 : i32
    %c0_i32_1 = arith.constant 0 : i32
    return %c0_i32, %c0_i32_0 : i32, i32
  }
  func.func @transform_8(%arg0: i32) -> (i32, i32) {
    %c0_i32 = arith.constant 0 : i32
    %c0_i32_0 = arith.constant 0 : i32
    %c0_i32_1 = arith.constant 0 : i32
    return %c0_i32, %c0_i32_0 : i32, i32
  }
  func.func @transform_9(%arg0: i32) -> (i32, i32) {
    %c0_i32 = arith.constant 0 : i32
    %c0_i32_0 = arith.constant 0 : i32
    %c0_i32_1 = arith.constant 0 : i32
    return %c0_i32, %c0_i32_0 : i32, i32
  }
  func.func @transform_10(%arg0: i32) -> (i32, i32) {
    %c0_i32 = arith.constant 0 : i32
    %c0_i32_0 = arith.constant 0 : i32
    %c0_i32_1 = arith.constant 0 : i32
    return %c0_i32, %c0_i32_0 : i32, i32
  }
  func.func @transform_11(%arg0: i32) -> (i32, i32) {
    %c0_i32 = arith.constant 0 : i32
    %c0_i32_0 = arith.constant 0 : i32
    %c0_i32_1 = arith.constant 0 : i32
    return %c0_i32, %c0_i32_0 : i32, i32
  }
  func.func @transform_12(%arg0: i32) -> (i32, i32) {
    %c0_i32 = arith.constant 0 : i32
    %c0_i32_0 = arith.constant 0 : i32
    %c0_i32_1 = arith.constant 0 : i32
    return %c0_i32, %c0_i32_0 : i32, i32
  }
  func.func @transform_13(%arg0: i32) -> (i32, i32) {
    %c0_i32 = arith.constant 0 : i32
    %c0_i32_0 = arith.constant 0 : i32
    %c0_i32_1 = arith.constant 0 : i32
    return %c0_i32, %c0_i32_0 : i32, i32
  }
  func.func @transform_14(%arg0: i32) -> (i32, i32) {
    %c0_i32 = arith.constant 0 : i32
    %c0_i32_0 = arith.constant 0 : i32
    %c0_i32_1 = arith.constant 0 : i32
    return %c0_i32, %c0_i32_0 : i32, i32
  }
  func.func @transform_15(%arg0: i32) -> (i32, i32) {
    %c0_i32 = arith.constant 0 : i32
    %c0_i32_0 = arith.constant 0 : i32
    %c0_i32_1 = arith.constant 0 : i32
    return %c0_i32, %c0_i32_0 : i32, i32
  }
  func.func @transform_16(%arg0: i32) -> (i32, i32) {
    %c0_i32 = arith.constant 0 : i32
    %c0_i32_0 = arith.constant 0 : i32
    return %arg0, %c0_i32 : i32, i32
  }
}

</mosaic_0001>

<llo_original>
// kernel: dexgan_forward.1
$region0: #{dexgan_forward.1}
  #allocation0 [shape = 'u32[]', space=smem, size = 0x4, offset = 0x4, fixed_abs, tag = 'smem constant byte address 0x4 - core index']
  #allocation1 [shape = 'u32[144,128]{1,0:T(1,128)}', space=vmem, size = 0x12000, scoped, tag = 'internal scratch']
  %s0 = inlined_call_operand.vmem [shape: bf16[16,8], index: 0, kind: input, shape index: {}]
  %s1 = inlined_call_operand.vmem [shape: bf16[16,64], index: 1, kind: input, shape index: {}]
  %s2 = inlined_call_operand.vmem [shape: bf16[8,16], index: 2, kind: input, shape index: {}]
  %s3 = inlined_call_operand.vmem [shape: bf16[64,16], index: 3, kind: input, shape index: {}]
  %s4 = inlined_call_operand.vmem [shape: bf16[16,32], index: 4, kind: input, shape index: {}]
  %s5 = inlined_call_operand.vmem [shape: bf16[8,32], index: 5, kind: input, shape index: {}]
  %s6 = inlined_call_operand.vmem [shape: bf16[64,32], index: 6, kind: input, shape index: {}]
  %s7 = inlined_call_operand.vmem [shape: bf16[8,16], index: 7, kind: input, shape index: {}]
  %s8 = inlined_call_operand.vmem [shape: bf16[64,16], index: 8, kind: input, shape index: {}]
  %s9 = inlined_call_operand.vmem [shape: bf16[32,16], index: 9, kind: input, shape index: {}]
  %s10 = inlined_call_operand.vmem [shape: bf16[16,32], index: 10, kind: input, shape index: {}]
  %s11 = inlined_call_operand.vmem [shape: bf16[8,32], index: 11, kind: input, shape index: {}]
  %s12 = inlined_call_operand.vmem [shape: bf16[64,32], index: 12, kind: input, shape index: {}]
  %s13 = inlined_call_operand.vmem [shape: bf16[32,32], index: 13, kind: input, shape index: {}]
  %s14 = inlined_call_operand.vmem [shape: bf16[32,128], index: 14, kind: input, shape index: {}]
  %s15 = inlined_call_operand.vmem [shape: f32[7,128], index: 15, kind: input, shape index: {}]
  %s16 = inlined_call_operand.vmem [shape: f32[16,128], index: 16, kind: output, shape index: {}]
  %s17 = sld [smem:[#allocation0]]
  $region74: #{dexgan_forward.1} parent=0
    _
  %s19 = ssub.s32 1, %s17
  %s20 = scalar_select 0, %s19, %s17
  // Predicated region
  $region2: #{dexgan_forward.1} parent=0 // pred_check
    _
  $region3: #{dexgan_forward.1} parent=0 // pred_check_branch
    %22 = sbr.rel (0) target = $region5
  $region4: #{dexgan_forward.1} parent=0 // pred_region
    _
  $region5: #{dexgan_forward.1} parent=0 // pred_fallthru
    _
  // Predicated region
  $region6: #{dexgan_forward.1} parent=0 // pred_check
    _
  $region7: #{dexgan_forward.1} parent=0 // pred_check_branch
    %24 = sbr.rel (0) target = $region9
  $region8: #{dexgan_forward.1} parent=0 // pred_region
    _
  $region9: #{dexgan_forward.1} parent=0 // pred_fallthru
    _
  // Predicated region
  $region10: #{dexgan_forward.1} parent=0 // pred_check
    _
  $region11: #{dexgan_forward.1} parent=0 // pred_check_branch
    %26 = sbr.rel (0) target = $region13
  $region12: #{dexgan_forward.1} parent=0 // pred_region
    _
  $region13: #{dexgan_forward.1} parent=0 // pred_fallthru
    _
  // Predicated region
  $region14: #{dexgan_forward.1} parent=0 // pred_check
    _
  $region15: #{dexgan_forward.1} parent=0 // pred_check_branch
    %28 = sbr.rel (0) target = $region17
  $region16: #{dexgan_forward.1} parent=0 // pred_region
    _
  $region17: #{dexgan_forward.1} parent=0 // pred_fallthru
    _
  // Predicated region
  $region18: #{dexgan_forward.1} parent=0 // pred_check
    _
  $region19: #{dexgan_forward.1} parent=0 // pred_check_branch
    %30 = sbr.rel (0) target = $region21
  $region20: #{dexgan_forward.1} parent=0 // pred_region
    _
  $region21: #{dexgan_forward.1} parent=0 // pred_fallthru
    _
  // Predicated region
  $region22: #{dexgan_forward.1} parent=0 // pred_check
    _
  $region23: #{dexgan_forward.1} parent=0 // pred_check_branch
    %32 = sbr.rel (0) target = $region25
  $region24: #{dexgan_forward.1} parent=0 // pred_region
    _
  $region25: #{dexgan_forward.1} parent=0 // pred_fallthru
    _
  // Predicated region
  $region26: #{dexgan_forward.1} parent=0 // pred_check
    _
  $region27: #{dexgan_forward.1} parent=0 // pred_check_branch
    %34 = sbr.rel (0) target = $region29
  $region28: #{dexgan_forward.1} parent=0 // pred_region
    _
  $region29: #{dexgan_forward.1} parent=0 // pred_fallthru
    _
  // Predicated region
  $region30: #{dexgan_forward.1} parent=0 // pred_check
    _
  $region31: #{dexgan_forward.1} parent=0 // pred_check_branch
    %36 = sbr.rel (0) target = $region33
  $region32: #{dexgan_forward.1} parent=0 // pred_region
    _
  $region33: #{dexgan_forward.1} parent=0 // pred_fallthru
    _
  // Predicated region
  $region34: #{dexgan_forward.1} parent=0 // pred_check
    _
  $region35: #{dexgan_forward.1} parent=0 // pred_check_branch
    %38 = sbr.rel (0) target = $region37
  $region36: #{dexgan_forward.1} parent=0 // pred_region
    _
  $region37: #{dexgan_forward.1} parent=0 // pred_fallthru
    _
  // Predicated region
  $region38: #{dexgan_forward.1} parent=0 // pred_check
    _
  $region39: #{dexgan_forward.1} parent=0 // pred_check_branch
    %40 = sbr.rel (0) target = $region41
  $region40: #{dexgan_forward.1} parent=0 // pred_region
    _
  $region41: #{dexgan_forward.1} parent=0 // pred_fallthru
    _
  // Predicated region
  $region42: #{dexgan_forward.1} parent=0 // pred_check
    _
  $region43: #{dexgan_forward.1} parent=0 // pred_check_branch
    %42 = sbr.rel (0) target = $region45
  $region44: #{dexgan_forward.1} parent=0 // pred_region
    _
  $region45: #{dexgan_forward.1} parent=0 // pred_fallthru
    _
  // Predicated region
  $region46: #{dexgan_forward.1} parent=0 // pred_check
    _
  $region47: #{dexgan_forward.1} parent=0 // pred_check_branch
    %44 = sbr.rel (0) target = $region49
  $region48: #{dexgan_forward.1} parent=0 // pred_region
    _
  $region49: #{dexgan_forward.1} parent=0 // pred_fallthru
    _
  // Predicated region
  $region50: #{dexgan_forward.1} parent=0 // pred_check
    _
  $region51: #{dexgan_forward.1} parent=0 // pred_check_branch
    %46 = sbr.rel (0) target = $region53
  $region52: #{dexgan_forward.1} parent=0 // pred_region
    _
  $region53: #{dexgan_forward.1} parent=0 // pred_fallthru
    _
  // Predicated region
  $region54: #{dexgan_forward.1} parent=0 // pred_check
    _
  $region55: #{dexgan_forward.1} parent=0 // pred_check_branch
    %48 = sbr.rel (0) target = $region57
  $region56: #{dexgan_forward.1} parent=0 // pred_region
    _
  $region57: #{dexgan_forward.1} parent=0 // pred_fallthru
    _
  // Predicated region
  $region58: #{dexgan_forward.1} parent=0 // pred_check
    _
  $region59: #{dexgan_forward.1} parent=0 // pred_check_branch
    %50 = sbr.rel (0) target = $region61
  $region60: #{dexgan_forward.1} parent=0 // pred_region
    _
  $region61: #{dexgan_forward.1} parent=0 // pred_fallthru
    _
  // Predicated region
  $region62: #{dexgan_forward.1} parent=0 // pred_check
    _
  $region63: #{dexgan_forward.1} parent=0 // pred_check_branch
    %52 = sbr.rel (0) target = $region65
  $region64: #{dexgan_forward.1} parent=0 // pred_region
    _
  $region65: #{dexgan_forward.1} parent=0 // pred_fallthru
    _
  %v54 = vld [vmem:[%s15] sm:$0x7f]
  %v55 = vld [vmem:[%s0] sm:$0xf]
  %v56 = vld [vmem:[%s0 + $0x4] sm:$0xf]
  %v57 = vld [vmem:[%s1] sm:$0xf]
  %v58 = vld [vmem:[%s1 + $0x4] sm:$0xf]
  %v59 = vld [vmem:[%s5] sm:$0xf]
  %v60 = vld [vmem:[%s6] sm:$0xf]
  %v61 = vld [vmem:[%s6 + $0x4] sm:$0xf]
  %v62 = vld [vmem:[%s6 + $0x8] sm:$0xf]
  %v63 = vld [vmem:[%s6 + $0xc] sm:$0xf]
  %v64 = vld [vmem:[%s6 + $0x10] sm:$0xf]
  %v65 = vld [vmem:[%s6 + $0x14] sm:$0xf]
  %v66 = vld [vmem:[%s6 + $0x18] sm:$0xf]
  %v67 = vld [vmem:[%s6 + $0x1c] sm:$0xf]
  %v70 = vunpack.c.l.b16 %v57
  %v71 = vunpack.c.l.b16 %v58
  %v72 = vpack.c.b16 %v71, %v70
  %v81 = vunpack.c.l.b16 %v60
  %v82 = vunpack.c.l.b16 %v61
  %v83 = vunpack.c.l.b16 %v62
  %v84 = vunpack.c.l.b16 %v63
  %v85 = vunpack.c.l.b16 %v64
  %v86 = vunpack.c.l.b16 %v65
  %v87 = vunpack.c.l.b16 %v66
  %v88 = vunpack.c.l.b16 %v67
  %v89 = vpack.c.b16 %v82, %v81
  %v90 = vpack.c.b16 %v84, %v83
  %v91 = vpack.c.b16 %v86, %v85
  %v92 = vpack.c.b16 %v88, %v87
  %vm97 = vcmask 523264
  %v99 = vsel %vm97, %v72, 0
  %101 = vmatprep.subr.bf16.mxu0 0
  %102 = vmatpush1.bf16.msra.mxu0 %v89
  %103 = vmatprep.subr.bf16.mxu0 0
  %104 = vmatpush1.bf16.msra.mxu0 %v90
  %105 = vmatprep.subr.bf16.mxu0 0
  %106 = vmatpush1.bf16.msra.mxu0 %v91
  %107 = vmatprep.subr.bf16.mxu0 0
  %108 = vmatpush1.bf16.msra.mxu0 %v92
  %109 = vmatprep.subr.bf16.mxu0 0
  %110 = vmatpush1.bf16.msra.mxu0 0
  %111 = vmatprep.subr.bf16.mxu0 0
  %112 = vmatpush1.bf16.msra.mxu0 0
  %113 = vmatprep.subr.bf16.mxu0 0
  %114 = vmatpush1.bf16.msra.mxu0 0
  %115 = vmatprep.subr.bf16.mxu0 0
  %116 = vmatpush1.bf16.msra.mxu0 0
  %117 = vmatprep.subr.bf16.mxu0 0
  %118 = vmatpush1.bf16.msra.mxu0 0
  %119 = vmatprep.subr.bf16.mxu0 0
  %120 = vmatpush1.bf16.msra.mxu0 0
  %121 = vmatprep.subr.bf16.mxu0 0
  %122 = vmatpush1.bf16.msra.mxu0 0
  %123 = vmatprep.subr.bf16.mxu0 0
  %124 = vmatpush1.bf16.msra.mxu0 0
  %125 = vmatprep.subr.bf16.mxu0 0
  %126 = vmatpush1.bf16.msra.mxu0 0
  %127 = vmatprep.subr.bf16.mxu0 0
  %128 = vmatpush1.bf16.msra.mxu0 0
  %129 = vmatprep.subr.bf16.mxu0 0
  %130 = vmatpush1.bf16.msra.mxu0 0
  %131 = vmatprep.subr.bf16.mxu0 0
  %132 = vmatpush1.bf16.msra.mxu0 0
  %133 = vmatprep.mubr.bf16.mxu0 0
  %134 = vmatmul.mubr.bf16.gmra.mrb[0].mxu0 %v99
  %v135 = vpop.f32.mrb[0].mxu0
  %v136 = vadd.f32 0.0, %v135
  %v137 = vpop.f32.mrb[0].mxu0
  %v138 = vpop.f32.mrb[0].mxu0
  %v139 = vadd.f32 0.0, %v138
  %v140 = vpop.f32.mrb[0].mxu0
  %141 = vdwg.mxu0
  %v144 = vunpack.c.l.b16 %v55
  %v145 = vunpack.c.l.b16 %v56
  %v146 = vpack.c.b16 %v145, %v144
  %vm147 = vcmask 64512
  %v149 = vsel %vm147, %v146, 0
  %vm151 = vcmask 1043456
  %v153 = vsel %vm151, %v59, 0
  %155 = vmatprep.subr.bf16.mxu0 0
  %156 = vmatpush1.bf16.msra.mxu0 %v153
  %157 = vmatprep.subr.bf16.mxu0 0
  %158 = vmatpush1.bf16.msra.mxu0 0
  %159 = vmatprep.subr.bf16.mxu0 0
  %160 = vmatpush1.bf16.msra.mxu0 0
  %161 = vmatprep.subr.bf16.mxu0 0
  %162 = vmatpush1.bf16.msra.mxu0 0
  %163 = vmatprep.subr.bf16.mxu0 0
  %164 = vmatpush1.bf16.msra.mxu0 0
  %165 = vmatprep.subr.bf16.mxu0 0
  %166 = vmatpush1.bf16.msra.mxu0 0
  %167 = vmatprep.subr.bf16.mxu0 0
  %168 = vmatpush1.bf16.msra.mxu0 0
  %169 = vmatprep.subr.bf16.mxu0 0
  %170 = vmatpush1.bf16.msra.mxu0 0
  %171 = vmatprep.subr.bf16.mxu0 0
  %172 = vmatpush1.bf16.msra.mxu0 0
  %173 = vmatprep.subr.bf16.mxu0 0
  %174 = vmatpush1.bf16.msra.mxu0 0
  %175 = vmatprep.subr.bf16.mxu0 0
  %176 = vmatpush1.bf16.msra.mxu0 0
  %177 = vmatprep.subr.bf16.mxu0 0
  %178 = vmatpush1.bf16.msra.mxu0 0
  %179 = vmatprep.subr.bf16.mxu0 0
  %180 = vmatpush1.bf16.msra.mxu0 0
  %181 = vmatprep.subr.bf16.mxu0 0
  %182 = vmatpush1.bf16.msra.mxu0 0
  %183 = vmatprep.subr.bf16.mxu0 0
  %184 = vmatpush1.bf16.msra.mxu0 0
  %185 = vmatprep.subr.bf16.mxu0 0
  %186 = vmatpush1.bf16.msra.mxu0 0
  %187 = vmatprep.mubr.bf16.mxu0 0
  %188 = vmatmul.mubr.bf16.gmra.mrb[0].mxu0 %v149
  %v189 = vpop.f32.mrb[0].mxu0
  %v190 = vadd.f32 %v136, %v189
  %v191 = vpop.f32.mrb[0].mxu0
  %v192 = vpop.f32.mrb[0].mxu0
  %v193 = vadd.f32 %v139, %v192
  %v194 = vpop.f32.mrb[0].mxu0
  %195 = vdwg.mxu0
  %v196 = vlaneseq
  %v197 = vshrl.u32 %v196, 7
  %v198 = vsub.s32 2, %v197
  %v199 = vrot.slane %v54, %v198
  %v200 = vadd.f32 %v190, %v199
  %v201 = vadd.f32 %v193, %v199
  %v202 = vmul.f32 %v200, 0.2
  %v203 = vmul.f32 %v201, 0.2
  %v204 = vmax.f32 %v200, %v202
  %v205 = vmax.f32 %v201, %v203
  %v206 = vld [vmem:[%s2] sm:$0xf]
  %v207 = vld [vmem:[%s3] sm:$0xf]
  %v208 = vld [vmem:[%s3 + $0x4] sm:$0xf]
  %v209 = vld [vmem:[%s3 + $0x8] sm:$0xf]
  %v210 = vld [vmem:[%s3 + $0xc] sm:$0xf]
  %v211 = vld [vmem:[%s3 + $0x10] sm:$0xf]
  %v212 = vld [vmem:[%s3 + $0x14] sm:$0xf]
  %v213 = vld [vmem:[%s3 + $0x18] sm:$0xf]
  %v214 = vld [vmem:[%s3 + $0x1c] sm:$0xf]
  %v223 = vunpack.c.l.b16 %v207
  %v224 = vunpack.c.l.b16 %v208
  %v225 = vunpack.c.l.b16 %v209
  %v226 = vunpack.c.l.b16 %v210
  %v227 = vunpack.c.l.b16 %v211
  %v228 = vunpack.c.l.b16 %v212
  %v229 = vunpack.c.l.b16 %v213
  %v230 = vunpack.c.l.b16 %v214
  %v231 = vpack.c.b16 %v224, %v223
  %v232 = vpack.c.b16 %v226, %v225
  %v233 = vpack.c.b16 %v228, %v227
  %v234 = vpack.c.b16 %v230, %v229
  %239 = vmatprep.subr.bf16.mxu0 0
  %240 = vmatpush1.bf16.msra.mxu0 %v231
  %241 = vmatprep.subr.bf16.mxu0 0
  %242 = vmatpush1.bf16.msra.mxu0 %v232
  %243 = vmatprep.subr.bf16.mxu0 0
  %244 = vmatpush1.bf16.msra.mxu0 %v233
  %245 = vmatprep.subr.bf16.mxu0 0
  %246 = vmatpush1.bf16.msra.mxu0 %v234
  %247 = vmatprep.subr.bf16.mxu0 0
  %248 = vmatpush1.bf16.msra.mxu0 0
  %249 = vmatprep.subr.bf16.mxu0 0
  %250 = vmatpush1.bf16.msra.mxu0 0
  %251 = vmatprep.subr.bf16.mxu0 0
  %252 = vmatpush1.bf16.msra.mxu0 0
  %253 = vmatprep.subr.bf16.mxu0 0
  %254 = vmatpush1.bf16.msra.mxu0 0
  %255 = vmatprep.subr.bf16.mxu0 0
  %256 = vmatpush1.bf16.msra.mxu0 0
  %257 = vmatprep.subr.bf16.mxu0 0
  %258 = vmatpush1.bf16.msra.mxu0 0
  %259 = vmatprep.subr.bf16.mxu0 0
  %260 = vmatpush1.bf16.msra.mxu0 0
  %261 = vmatprep.subr.bf16.mxu0 0
  %262 = vmatpush1.bf16.msra.mxu0 0
  %263 = vmatprep.subr.bf16.mxu0 0
  %264 = vmatpush1.bf16.msra.mxu0 0
  %265 = vmatprep.subr.bf16.mxu0 0
  %266 = vmatpush1.bf16.msra.mxu0 0
  %267 = vmatprep.subr.bf16.mxu0 0
  %268 = vmatpush1.bf16.msra.mxu0 0
  %269 = vmatprep.subr.bf16.mxu0 0
  %270 = vmatpush1.bf16.msra.mxu0 0
  %271 = vmatprep.mubr.bf16.mxu0 0
  %272 = vmatmul.mubr.bf16.gmra.mrb[0].mxu0 %v99
  %v273 = vpop.f32.mrb[0].mxu0
  %v274 = vadd.f32 0.0, %v273
  %v275 = vpop.f32.mrb[0].mxu0
  %v276 = vpop.f32.mrb[0].mxu0
  %v277 = vadd.f32 0.0, %v276
  %v278 = vpop.f32.mrb[0].mxu0
  %279 = vdwg.mxu0
  %v281 = vsel %vm151, %v206, 0
  %283 = vmatprep.subr.bf16.mxu0 0
  %284 = vmatpush1.bf16.msra.mxu0 %v281
  %285 = vmatprep.subr.bf16.mxu0 0
  %286 = vmatpush1.bf16.msra.mxu0 0
  %287 = vmatprep.subr.bf16.mxu0 0
  %288 = vmatpush1.bf16.msra.mxu0 0
  %289 = vmatprep.subr.bf16.mxu0 0
  %290 = vmatpush1.bf16.msra.mxu0 0
  %291 = vmatprep.subr.bf16.mxu0 0
  %292 = vmatpush1.bf16.msra.mxu0 0
  %293 = vmatprep.subr.bf16.mxu0 0
  %294 = vmatpush1.bf16.msra.mxu0 0
  %295 = vmatprep.subr.bf16.mxu0 0
  %296 = vmatpush1.bf16.msra.mxu0 0
  %297 = vmatprep.subr.bf16.mxu0 0
  %298 = vmatpush1.bf16.msra.mxu0 0
  %299 = vmatprep.subr.bf16.mxu0 0
  %300 = vmatpush1.bf16.msra.mxu0 0
  %301 = vmatprep.subr.bf16.mxu0 0
  %302 = vmatpush1.bf16.msra.mxu0 0
  %303 = vmatprep.subr.bf16.mxu0 0
  %304 = vmatpush1.bf16.msra.mxu0 0
  %305 = vmatprep.subr.bf16.mxu0 0
  %306 = vmatpush1.bf16.msra.mxu0 0
  %307 = vmatprep.subr.bf16.mxu0 0
  %308 = vmatpush1.bf16.msra.mxu0 0
  %309 = vmatprep.subr.bf16.mxu0 0
  %310 = vmatpush1.bf16.msra.mxu0 0
  %311 = vmatprep.subr.bf16.mxu0 0
  %312 = vmatpush1.bf16.msra.mxu0 0
  %313 = vmatprep.subr.bf16.mxu0 0
  %314 = vmatpush1.bf16.msra.mxu0 0
  %315 = vmatprep.mubr.bf16.mxu0 0
  %316 = vmatmul.mubr.bf16.gmra.mrb[0].mxu0 %v149
  %v317 = vpop.f32.mrb[0].mxu0
  %v318 = vadd.f32 %v274, %v317
  %v319 = vpop.f32.mrb[0].mxu0
  %v320 = vpop.f32.mrb[0].mxu0
  %v321 = vadd.f32 %v277, %v320
  %v322 = vpop.f32.mrb[0].mxu0
  %323 = vdwg.mxu0
  %v324 = vlaneseq
  %v325 = vshrl.u32 %v324, 7
  %v326 = vsub.s32 0, %v325
  %v327 = vrot.slane %v54, %v326
  %v328 = vadd.f32 %v318, %v327
  %v329 = vadd.f32 %v321, %v327
  %v330 = vmul.f32 %v328, 0.2
  %v331 = vmul.f32 %v329, 0.2
  %v332 = vmax.f32 %v328, %v330
  %v333 = vmax.f32 %v329, %v331
  %v334 = vpack.c.bf16 %v333, %v332
  %v335 = vld [vmem:[%s4] sm:$0xf]
  %v336 = vld [vmem:[%s4 + $0x4] sm:$0xf]
  %v337 = vlaneseq
  %v338 = vshrl.u32 %v337, 7
  %v339 = vsub.s32 1, %v338
  %v340 = vrot.slane %v54, %v339
  %v343 = vunpack.c.l.b16 %v335
  %v344 = vunpack.c.l.b16 %v336
  %v345 = vpack.c.b16 %v344, %v343
  %vm347 = vcmask 130048
  %v349 = vsel %vm347, %v334, 0
  %351 = vmatprep.subr.bf16.mxu0 0
  %352 = vmatpush1.bf16.msra.mxu0 %v345
  %353 = vmatprep.subr.bf16.mxu0 0
  %354 = vmatpush1.bf16.msra.mxu0 0
  %355 = vmatprep.subr.bf16.mxu0 0
  %356 = vmatpush1.bf16.msra.mxu0 0
  %357 = vmatprep.subr.bf16.mxu0 0
  %358 = vmatpush1.bf16.msra.mxu0 0
  %359 = vmatprep.subr.bf16.mxu0 0
  %360 = vmatpush1.bf16.msra.mxu0 0
  %361 = vmatprep.subr.bf16.mxu0 0
  %362 = vmatpush1.bf16.msra.mxu0 0
  %363 = vmatprep.subr.bf16.mxu0 0
  %364 = vmatpush1.bf16.msra.mxu0 0
  %365 = vmatprep.subr.bf16.mxu0 0
  %366 = vmatpush1.bf16.msra.mxu0 0
  %367 = vmatprep.subr.bf16.mxu0 0
  %368 = vmatpush1.bf16.msra.mxu0 0
  %369 = vmatprep.subr.bf16.mxu0 0
  %370 = vmatpush1.bf16.msra.mxu0 0
  %371 = vmatprep.subr.bf16.mxu0 0
  %372 = vmatpush1.bf16.msra.mxu0 0
  %373 = vmatprep.subr.bf16.mxu0 0
  %374 = vmatpush1.bf16.msra.mxu0 0
  %375 = vmatprep.subr.bf16.mxu0 0
  %376 = vmatpush1.bf16.msra.mxu0 0
  %377 = vmatprep.subr.bf16.mxu0 0
  %378 = vmatpush1.bf16.msra.mxu0 0
  %379 = vmatprep.subr.bf16.mxu0 0
  %380 = vmatpush1.bf16.msra.mxu0 0
  %381 = vmatprep.subr.bf16.mxu0 0
  %382 = vmatpush1.bf16.msra.mxu0 0
  %383 = vmatprep.mubr.bf16.mxu0 0
  %384 = vmatmul.mubr.bf16.gmra.mrb[0].mxu0 %v349
  %v385 = vpop.f32.mrb[0].mxu0
  %v386 = vadd.f32 %v340, %v385
  %v387 = vpop.f32.mrb[0].mxu0
  %v388 = vpop.f32.mrb[0].mxu0
  %v389 = vadd.f32 %v340, %v388
  %v390 = vpop.f32.mrb[0].mxu0
  %391 = vdwg.mxu0
  %v392 = vadd.f32 %v204, %v386
  %v393 = vadd.f32 %v205, %v389
  %v394 = vmul.f32 %v392, 0.2
  %v395 = vmul.f32 %v393, 0.2
  %v396 = vmax.f32 %v392, %v394
  %v397 = vmax.f32 %v393, %v395
  %v398 = vpack.c.bf16 %v397, %v396
  %v399 = vld [vmem:[%s11] sm:$0xf]
  %v400 = vld [vmem:[%s12] sm:$0xf]
  %v401 = vld [vmem:[%s12 + $0x4] sm:$0xf]
  %v402 = vld [vmem:[%s12 + $0x8] sm:$0xf]
  %v403 = vld [vmem:[%s12 + $0xc] sm:$0xf]
  %v404 = vld [vmem:[%s12 + $0x10] sm:$0xf]
  %v405 = vld [vmem:[%s12 + $0x14] sm:$0xf]
  %v406 = vld [vmem:[%s12 + $0x18] sm:$0xf]
  %v407 = vld [vmem:[%s12 + $0x1c] sm:$0xf]
  %v416 = vunpack.c.l.b16 %v400
  %v417 = vunpack.c.l.b16 %v401
  %v418 = vunpack.c.l.b16 %v402
  %v419 = vunpack.c.l.b16 %v403
  %v420 = vunpack.c.l.b16 %v404
  %v421 = vunpack.c.l.b16 %v405
  %v422 = vunpack.c.l.b16 %v406
  %v423 = vunpack.c.l.b16 %v407
  %v424 = vpack.c.b16 %v417, %v416
  %v425 = vpack.c.b16 %v419, %v418
  %v426 = vpack.c.b16 %v421, %v420
  %v427 = vpack.c.b16 %v423, %v422
  %432 = vmatprep.subr.bf16.mxu0 0
  %433 = vmatpush1.bf16.msra.mxu0 %v424
  %434 = vmatprep.subr.bf16.mxu0 0
  %435 = vmatpush1.bf16.msra.mxu0 %v425
  %436 = vmatprep.subr.bf16.mxu0 0
  %437 = vmatpush1.bf16.msra.mxu0 %v426
  %438 = vmatprep.subr.bf16.mxu0 0
  %439 = vmatpush1.bf16.msra.mxu0 %v427
  %440 = vmatprep.subr.bf16.mxu0 0
  %441 = vmatpush1.bf16.msra.mxu0 0
  %442 = vmatprep.subr.bf16.mxu0 0
  %443 = vmatpush1.bf16.msra.mxu0 0
  %444 = vmatprep.subr.bf16.mxu0 0
  %445 = vmatpush1.bf16.msra.mxu0 0
  %446 = vmatprep.subr.bf16.mxu0 0
  %447 = vmatpush1.bf16.msra.mxu0 0
  %448 = vmatprep.subr.bf16.mxu0 0
  %449 = vmatpush1.bf16.msra.mxu0 0
  %450 = vmatprep.subr.bf16.mxu0 0
  %451 = vmatpush1.bf16.msra.mxu0 0
  %452 = vmatprep.subr.bf16.mxu0 0
  %453 = vmatpush1.bf16.msra.mxu0 0
  %454 = vmatprep.subr.bf16.mxu0 0
  %455 = vmatpush1.bf16.msra.mxu0 0
  %456 = vmatprep.subr.bf16.mxu0 0
  %457 = vmatpush1.bf16.msra.mxu0 0
  %458 = vmatprep.subr.bf16.mxu0 0
  %459 = vmatpush1.bf16.msra.mxu0 0
  %460 = vmatprep.subr.bf16.mxu0 0
  %461 = vmatpush1.bf16.msra.mxu0 0
  %462 = vmatprep.subr.bf16.mxu0 0
  %463 = vmatpush1.bf16.msra.mxu0 0
  %464 = vmatprep.mubr.bf16.mxu0 0
  %465 = vmatmul.mubr.bf16.gmra.mrb[0].mxu0 %v99
  %v466 = vpop.f32.mrb[0].mxu0
  %v467 = vadd.f32 0.0, %v466
  %v468 = vpop.f32.mrb[0].mxu0
  %v469 = vpop.f32.mrb[0].mxu0
  %v470 = vadd.f32 0.0, %v469
  %v471 = vpop.f32.mrb[0].mxu0
  %472 = vdwg.mxu0
  %v474 = vsel %vm151, %v399, 0
  %476 = vmatprep.subr.bf16.mxu0 0
  %477 = vmatpush1.bf16.msra.mxu0 %v474
  %478 = vmatprep.subr.bf16.mxu0 0
  %479 = vmatpush1.bf16.msra.mxu0 0
  %480 = vmatprep.subr.bf16.mxu0 0
  %481 = vmatpush1.bf16.msra.mxu0 0
  %482 = vmatprep.subr.bf16.mxu0 0
  %483 = vmatpush1.bf16.msra.mxu0 0
  %484 = vmatprep.subr.bf16.mxu0 0
  %485 = vmatpush1.bf16.msra.mxu0 0
  %486 = vmatprep.subr.bf16.mxu0 0
  %487 = vmatpush1.bf16.msra.mxu0 0
  %488 = vmatprep.subr.bf16.mxu0 0
  %489 = vmatpush1.bf16.msra.mxu0 0
  %490 = vmatprep.subr.bf16.mxu0 0
  %491 = vmatpush1.bf16.msra.mxu0 0
  %492 = vmatprep.subr.bf16.mxu0 0
  %493 = vmatpush1.bf16.msra.mxu0 0
  %494 = vmatprep.subr.bf16.mxu0 0
  %495 = vmatpush1.bf16.msra.mxu0 0
  %496 = vmatprep.subr.bf16.mxu0 0
  %497 = vmatpush1.bf16.msra.mxu0 0
  %498 = vmatprep.subr.bf16.mxu0 0
  %499 = vmatpush1.bf16.msra.mxu0 0
  %500 = vmatprep.subr.bf16.mxu0 0
  %501 = vmatpush1.bf16.msra.mxu0 0
  %502 = vmatprep.subr.bf16.mxu0 0
  %503 = vmatpush1.bf16.msra.mxu0 0
  %504 = vmatprep.subr.bf16.mxu0 0
  %505 = vmatpush1.bf16.msra.mxu0 0
  %506 = vmatprep.subr.bf16.mxu0 0
  %507 = vmatpush1.bf16.msra.mxu0 0
  %508 = vmatprep.mubr.bf16.mxu0 0
  %509 = vmatmul.mubr.bf16.gmra.mrb[0].mxu0 %v149
  %v510 = vpop.f32.mrb[0].mxu0
  %v511 = vadd.f32 %v467, %v510
  %v512 = vpop.f32.mrb[0].mxu0
  %v513 = vpop.f32.mrb[0].mxu0
  %v514 = vadd.f32 %v470, %v513
  %v515 = vpop.f32.mrb[0].mxu0
  %516 = vdwg.mxu0
  %v517 = vld [vmem:[%s13] sm:$0xf]
  %v518 = vld [vmem:[%s13 + $0x4] sm:$0xf]
  %v519 = vld [vmem:[%s13 + $0x8] sm:$0xf]
  %v520 = vld [vmem:[%s13 + $0xc] sm:$0xf]
  %v525 = vunpack.c.l.b16 %v517
  %v526 = vunpack.c.l.b16 %v518
  %v527 = vunpack.c.l.b16 %v519
  %v528 = vunpack.c.l.b16 %v520
  %v529 = vpack.c.b16 %v526, %v525
  %v530 = vpack.c.b16 %v528, %v527
  %vm533 = vcmask 261120
  %v535 = vsel %vm533, %v398, 0
  %537 = vmatprep.subr.bf16.mxu0 0
  %538 = vmatpush1.bf16.msra.mxu0 %v529
  %539 = vmatprep.subr.bf16.mxu0 0
  %540 = vmatpush1.bf16.msra.mxu0 %v530
  %541 = vmatprep.subr.bf16.mxu0 0
  %542 = vmatpush1.bf16.msra.mxu0 0
  %543 = vmatprep.subr.bf16.mxu0 0
  %544 = vmatpush1.bf16.msra.mxu0 0
  %545 = vmatprep.subr.bf16.mxu0 0
  %546 = vmatpush1.bf16.msra.mxu0 0
  %547 = vmatprep.subr.bf16.mxu0 0
  %548 = vmatpush1.bf16.msra.mxu0 0
  %549 = vmatprep.subr.bf16.mxu0 0
  %550 = vmatpush1.bf16.msra.mxu0 0
  %551 = vmatprep.subr.bf16.mxu0 0
  %552 = vmatpush1.bf16.msra.mxu0 0
  %553 = vmatprep.subr.bf16.mxu0 0
  %554 = vmatpush1.bf16.msra.mxu0 0
  %555 = vmatprep.subr.bf16.mxu0 0
  %556 = vmatpush1.bf16.msra.mxu0 0
  %557 = vmatprep.subr.bf16.mxu0 0
  %558 = vmatpush1.bf16.msra.mxu0 0
  %559 = vmatprep.subr.bf16.mxu0 0
  %560 = vmatpush1.bf16.msra.mxu0 0
  %561 = vmatprep.subr.bf16.mxu0 0
  %562 = vmatpush1.bf16.msra.mxu0 0
  %563 = vmatprep.subr.bf16.mxu0 0
  %564 = vmatpush1.bf16.msra.mxu0 0
  %565 = vmatprep.subr.bf16.mxu0 0
  %566 = vmatpush1.bf16.msra.mxu0 0
  %567 = vmatprep.subr.bf16.mxu0 0
  %568 = vmatpush1.bf16.msra.mxu0 0
  %569 = vmatprep.mubr.bf16.mxu0 0
  %570 = vmatmul.mubr.bf16.gmra.mrb[0].mxu0 %v535
  %v571 = vpop.f32.mrb[0].mxu0
  %v572 = vadd.f32 0.0, %v571
  %v573 = vpop.f32.mrb[0].mxu0
  %v574 = vpop.f32.mrb[0].mxu0
  %v575 = vadd.f32 0.0, %v574
  %v576 = vpop.f32.mrb[0].mxu0
  %577 = vdwg.mxu0
  %v578 = vadd.f32 %v511, %v572
  %v579 = vadd.f32 %v514, %v575
  %v580 = vlaneseq
  %v581 = vshrl.u32 %v580, 7
  %v582 = vsub.s32 5, %v581
  %v583 = vrot.slane %v54, %v582
  %v584 = vadd.f32 %v578, %v583
  %v585 = vadd.f32 %v579, %v583
  %v586 = vmul.f32 %v584, 0.2
  %v587 = vmul.f32 %v585, 0.2
  %v588 = vmax.f32 %v584, %v586
  %v589 = vmax.f32 %v585, %v587
  %v590 = vld [vmem:[%s7] sm:$0xf]
  %v591 = vld [vmem:[%s8] sm:$0xf]
  %v592 = vld [vmem:[%s8 + $0x4] sm:$0xf]
  %v593 = vld [vmem:[%s8 + $0x8] sm:$0xf]
  %v594 = vld [vmem:[%s8 + $0xc] sm:$0xf]
  %v595 = vld [vmem:[%s8 + $0x10] sm:$0xf]
  %v596 = vld [vmem:[%s8 + $0x14] sm:$0xf]
  %v597 = vld [vmem:[%s8 + $0x18] sm:$0xf]
  %v598 = vld [vmem:[%s8 + $0x1c] sm:$0xf]
  %v607 = vunpack.c.l.b16 %v591
  %v608 = vunpack.c.l.b16 %v592
  %v609 = vunpack.c.l.b16 %v593
  %v610 = vunpack.c.l.b16 %v594
  %v611 = vunpack.c.l.b16 %v595
  %v612 = vunpack.c.l.b16 %v596
  %v613 = vunpack.c.l.b16 %v597
  %v614 = vunpack.c.l.b16 %v598
  %v615 = vpack.c.b16 %v608, %v607
  %v616 = vpack.c.b16 %v610, %v609
  %v617 = vpack.c.b16 %v612, %v611
  %v618 = vpack.c.b16 %v614, %v613
  %623 = vmatprep.subr.bf16.mxu0 0
  %624 = vmatpush1.bf16.msra.mxu0 %v615
  %625 = vmatprep.subr.bf16.mxu0 0
  %626 = vmatpush1.bf16.msra.mxu0 %v616
  %627 = vmatprep.subr.bf16.mxu0 0
  %628 = vmatpush1.bf16.msra.mxu0 %v617
  %629 = vmatprep.subr.bf16.mxu0 0
  %630 = vmatpush1.bf16.msra.mxu0 %v618
  %631 = vmatprep.subr.bf16.mxu0 0
  %632 = vmatpush1.bf16.msra.mxu0 0
  %633 = vmatprep.subr.bf16.mxu0 0
  %634 = vmatpush1.bf16.msra.mxu0 0
  %635 = vmatprep.subr.bf16.mxu0 0
  %636 = vmatpush1.bf16.msra.mxu0 0
  %637 = vmatprep.subr.bf16.mxu0 0
  %638 = vmatpush1.bf16.msra.mxu0 0
  %639 = vmatprep.subr.bf16.mxu0 0
  %640 = vmatpush1.bf16.msra.mxu0 0
  %641 = vmatprep.subr.bf16.mxu0 0
  %642 = vmatpush1.bf16.msra.mxu0 0
  %643 = vmatprep.subr.bf16.mxu0 0
  %644 = vmatpush1.bf16.msra.mxu0 0
  %645 = vmatprep.subr.bf16.mxu0 0
  %646 = vmatpush1.bf16.msra.mxu0 0
  %647 = vmatprep.subr.bf16.mxu0 0
  %648 = vmatpush1.bf16.msra.mxu0 0
  %649 = vmatprep.subr.bf16.mxu0 0
  %650 = vmatpush1.bf16.msra.mxu0 0
  %651 = vmatprep.subr.bf16.mxu0 0
  %652 = vmatpush1.bf16.msra.mxu0 0
  %653 = vmatprep.subr.bf16.mxu0 0
  %654 = vmatpush1.bf16.msra.mxu0 0
  %655 = vmatprep.mubr.bf16.mxu0 0
  %656 = vmatmul.mubr.bf16.gmra.mrb[0].mxu0 %v99
  %v657 = vpop.f32.mrb[0].mxu0
  %v658 = vadd.f32 0.0, %v657
  %v659 = vpop.f32.mrb[0].mxu0
  %v660 = vpop.f32.mrb[0].mxu0
  %v661 = vadd.f32 0.0, %v660
  %v662 = vpop.f32.mrb[0].mxu0
  %663 = vdwg.mxu0
  %v665 = vsel %vm151, %v590, 0
  %667 = vmatprep.subr.bf16.mxu0 0
  %668 = vmatpush1.bf16.msra.mxu0 %v665
  %669 = vmatprep.subr.bf16.mxu0 0
  %670 = vmatpush1.bf16.msra.mxu0 0
  %671 = vmatprep.subr.bf16.mxu0 0
  %672 = vmatpush1.bf16.msra.mxu0 0
  %673 = vmatprep.subr.bf16.mxu0 0
  %674 = vmatpush1.bf16.msra.mxu0 0
  %675 = vmatprep.subr.bf16.mxu0 0
  %676 = vmatpush1.bf16.msra.mxu0 0
  %677 = vmatprep.subr.bf16.mxu0 0
  %678 = vmatpush1.bf16.msra.mxu0 0
  %679 = vmatprep.subr.bf16.mxu0 0
  %680 = vmatpush1.bf16.msra.mxu0 0
  %681 = vmatprep.subr.bf16.mxu0 0
  %682 = vmatpush1.bf16.msra.mxu0 0
  %683 = vmatprep.subr.bf16.mxu0 0
  %684 = vmatpush1.bf16.msra.mxu0 0
  %685 = vmatprep.subr.bf16.mxu0 0
  %686 = vmatpush1.bf16.msra.mxu0 0
  %687 = vmatprep.subr.bf16.mxu0 0
  %688 = vmatpush1.bf16.msra.mxu0 0
  %689 = vmatprep.subr.bf16.mxu0 0
  %690 = vmatpush1.bf16.msra.mxu0 0
  %691 = vmatprep.subr.bf16.mxu0 0
  %692 = vmatpush1.bf16.msra.mxu0 0
  %693 = vmatprep.subr.bf16.mxu0 0
  %694 = vmatpush1.bf16.msra.mxu0 0
  %695 = vmatprep.subr.bf16.mxu0 0
  %696 = vmatpush1.bf16.msra.mxu0 0
  %697 = vmatprep.subr.bf16.mxu0 0
  %698 = vmatpush1.bf16.msra.mxu0 0
  %699 = vmatprep.mubr.bf16.mxu0 0
  %700 = vmatmul.mubr.bf16.gmra.mrb[0].mxu0 %v149
  %v701 = vpop.f32.mrb[0].mxu0
  %v702 = vadd.f32 %v658, %v701
  %v703 = vpop.f32.mrb[0].mxu0
  %v704 = vpop.f32.mrb[0].mxu0
  %v705 = vadd.f32 %v661, %v704
  %v706 = vpop.f32.mrb[0].mxu0
  %707 = vdwg.mxu0
  %v708 = vld [vmem:[%s9] sm:$0xf]
  %v709 = vld [vmem:[%s9 + $0x4] sm:$0xf]
  %v710 = vld [vmem:[%s9 + $0x8] sm:$0xf]
  %v711 = vld [vmem:[%s9 + $0xc] sm:$0xf]
  %v716 = vunpack.c.l.b16 %v708
  %v717 = vunpack.c.l.b16 %v709
  %v718 = vunpack.c.l.b16 %v710
  %v719 = vunpack.c.l.b16 %v711
  %v720 = vpack.c.b16 %v717, %v716
  %v721 = vpack.c.b16 %v719, %v718
  %724 = vmatprep.subr.bf16.mxu0 0
  %725 = vmatpush1.bf16.msra.mxu0 %v720
  %726 = vmatprep.subr.bf16.mxu0 0
  %727 = vmatpush1.bf16.msra.mxu0 %v721
  %728 = vmatprep.subr.bf16.mxu0 0
  %729 = vmatpush1.bf16.msra.mxu0 0
  %730 = vmatprep.subr.bf16.mxu0 0
  %731 = vmatpush1.bf16.msra.mxu0 0
  %732 = vmatprep.subr.bf16.mxu0 0
  %733 = vmatpush1.bf16.msra.mxu0 0
  %734 = vmatprep.subr.bf16.mxu0 0
  %735 = vmatpush1.bf16.msra.mxu0 0
  %736 = vmatprep.subr.bf16.mxu0 0
  %737 = vmatpush1.bf16.msra.mxu0 0
  %738 = vmatprep.subr.bf16.mxu0 0
  %739 = vmatpush1.bf16.msra.mxu0 0
  %740 = vmatprep.subr.bf16.mxu0 0
  %741 = vmatpush1.bf16.msra.mxu0 0
  %742 = vmatprep.subr.bf16.mxu0 0
  %743 = vmatpush1.bf16.msra.mxu0 0
  %744 = vmatprep.subr.bf16.mxu0 0
  %745 = vmatpush1.bf16.msra.mxu0 0
  %746 = vmatprep.subr.bf16.mxu0 0
  %747 = vmatpush1.bf16.msra.mxu0 0
  %748 = vmatprep.subr.bf16.mxu0 0
  %749 = vmatpush1.bf16.msra.mxu0 0
  %750 = vmatprep.subr.bf16.mxu0 0
  %751 = vmatpush1.bf16.msra.mxu0 0
  %752 = vmatprep.subr.bf16.mxu0 0
  %753 = vmatpush1.bf16.msra.mxu0 0
  %754 = vmatprep.subr.bf16.mxu0 0
  %755 = vmatpush1.bf16.msra.mxu0 0
  %756 = vmatprep.mubr.bf16.mxu0 0
  %757 = vmatmul.mubr.bf16.gmra.mrb[0].mxu0 %v535
  %v758 = vpop.f32.mrb[0].mxu0
  %v759 = vadd.f32 0.0, %v758
  %v760 = vpop.f32.mrb[0].mxu0
  %v761 = vpop.f32.mrb[0].mxu0
  %v762 = vadd.f32 0.0, %v761
  %v763 = vpop.f32.mrb[0].mxu0
  %764 = vdwg.mxu0
  %v765 = vadd.f32 %v702, %v759
  %v766 = vadd.f32 %v705, %v762
  %v767 = vlaneseq
  %v768 = vshrl.u32 %v767, 7
  %v769 = vsub.s32 3, %v768
  %v770 = vrot.slane %v54, %v769
  %v771 = vadd.f32 %v765, %v770
  %v772 = vadd.f32 %v766, %v770
  %v773 = vmul.f32 %v771, 0.2
  %v774 = vmul.f32 %v772, 0.2
  %v775 = vmax.f32 %v771, %v773
  %v776 = vmax.f32 %v772, %v774
  %v777 = vpack.c.bf16 %v776, %v775
  %v778 = vld [vmem:[%s10] sm:$0xf]
  %v779 = vld [vmem:[%s10 + $0x4] sm:$0xf]
  %v780 = vlaneseq
  %v781 = vshrl.u32 %v780, 7
  %v782 = vsub.s32 4, %v781
  %v783 = vrot.slane %v54, %v782
  %v786 = vunpack.c.l.b16 %v778
  %v787 = vunpack.c.l.b16 %v779
  %v788 = vpack.c.b16 %v787, %v786
  %v791 = vsel %vm347, %v777, 0
  %793 = vmatprep.subr.bf16.mxu0 0
  %794 = vmatpush1.bf16.msra.mxu0 %v788
  %795 = vmatprep.subr.bf16.mxu0 0
  %796 = vmatpush1.bf16.msra.mxu0 0
  %797 = vmatprep.subr.bf16.mxu0 0
  %798 = vmatpush1.bf16.msra.mxu0 0
  %799 = vmatprep.subr.bf16.mxu0 0
  %800 = vmatpush1.bf16.msra.mxu0 0
  %801 = vmatprep.subr.bf16.mxu0 0
  %802 = vmatpush1.bf16.msra.mxu0 0
  %803 = vmatprep.subr.bf16.mxu0 0
  %804 = vmatpush1.bf16.msra.mxu0 0
  %805 = vmatprep.subr.bf16.mxu0 0
  %806 = vmatpush1.bf16.msra.mxu0 0
  %807 = vmatprep.subr.bf16.mxu0 0
  %808 = vmatpush1.bf16.msra.mxu0 0
  %809 = vmatprep.subr.bf16.mxu0 0
  %810 = vmatpush1.bf16.msra.mxu0 0
  %811 = vmatprep.subr.bf16.mxu0 0
  %812 = vmatpush1.bf16.msra.mxu0 0
  %813 = vmatprep.subr.bf16.mxu0 0
  %814 = vmatpush1.bf16.msra.mxu0 0
  %815 = vmatprep.subr.bf16.mxu0 0
  %816 = vmatpush1.bf16.msra.mxu0 0
  %817 = vmatprep.subr.bf16.mxu0 0
  %818 = vmatpush1.bf16.msra.mxu0 0
  %819 = vmatprep.subr.bf16.mxu0 0
  %820 = vmatpush1.bf16.msra.mxu0 0
  %821 = vmatprep.subr.bf16.mxu0 0
  %822 = vmatpush1.bf16.msra.mxu0 0
  %823 = vmatprep.subr.bf16.mxu0 0
  %824 = vmatpush1.bf16.msra.mxu0 0
  %825 = vmatprep.mubr.bf16.mxu0 0
  %826 = vmatmul.mubr.bf16.gmra.mrb[0].mxu0 %v791
  %v827 = vpop.f32.mrb[0].mxu0
  %v828 = vadd.f32 %v783, %v827
  %v829 = vpop.f32.mrb[0].mxu0
  %v830 = vpop.f32.mrb[0].mxu0
  %v831 = vadd.f32 %v783, %v830
  %v832 = vpop.f32.mrb[0].mxu0
  %833 = vdwg.mxu0
  %v834 = vadd.f32 %v588, %v828
  %v835 = vadd.f32 %v589, %v831
  %v836 = vmul.f32 %v834, 0.2
  %v837 = vmul.f32 %v835, 0.2
  %v838 = vmax.f32 %v834, %v836
  %v839 = vmax.f32 %v835, %v837
  %v840 = vpack.c.bf16 %v839, %v838
  %v841 = vld [vmem:[%s14] sm:$0xf]
  %v842 = vld [vmem:[%s14 + $0x4] sm:$0xf]
  %v843 = vld [vmem:[%s14 + $0x8] sm:$0xf]
  %v844 = vld [vmem:[%s14 + $0xc] sm:$0xf]
  %v845 = vlaneseq
  %v846 = vshrl.u32 %v845, 7
  %v847 = vsub.s32 6, %v846
  %v848 = vrot.slane %v54, %v847
  %v853 = vunpack.c.l.b16 %v841
  %v854 = vunpack.c.l.b16 %v842
  %v855 = vunpack.c.l.b16 %v843
  %v856 = vunpack.c.l.b16 %v844
  %v857 = vpack.c.b16 %v854, %v853
  %v858 = vpack.c.b16 %v856, %v855
  %v862 = vsel %vm533, %v840, 0
  %864 = vmatprep.subr.bf16.mxu0 0
  %865 = vmatpush1.bf16.msra.mxu0 %v857
  %866 = vmatprep.subr.bf16.mxu0 0
  %867 = vmatpush1.bf16.msra.mxu0 %v858
  %868 = vmatprep.subr.bf16.mxu0 0
  %869 = vmatpush1.bf16.msra.mxu0 0
  %870 = vmatprep.subr.bf16.mxu0 0
  %871 = vmatpush1.bf16.msra.mxu0 0
  %872 = vmatprep.subr.bf16.mxu0 0
  %873 = vmatpush1.bf16.msra.mxu0 0
  %874 = vmatprep.subr.bf16.mxu0 0
  %875 = vmatpush1.bf16.msra.mxu0 0
  %876 = vmatprep.subr.bf16.mxu0 0
  %877 = vmatpush1.bf16.msra.mxu0 0
  %878 = vmatprep.subr.bf16.mxu0 0
  %879 = vmatpush1.bf16.msra.mxu0 0
  %880 = vmatprep.subr.bf16.mxu0 0
  %881 = vmatpush1.bf16.msra.mxu0 0
  %882 = vmatprep.subr.bf16.mxu0 0
  %883 = vmatpush1.bf16.msra.mxu0 0
  %884 = vmatprep.subr.bf16.mxu0 0
  %885 = vmatpush1.bf16.msra.mxu0 0
  %886 = vmatprep.subr.bf16.mxu0 0
  %887 = vmatpush1.bf16.msra.mxu0 0
  %888 = vmatprep.subr.bf16.mxu0 0
  %889 = vmatpush1.bf16.msra.mxu0 0
  %890 = vmatprep.subr.bf16.mxu0 0
  %891 = vmatpush1.bf16.msra.mxu0 0
  %892 = vmatprep.subr.bf16.mxu0 0
  %893 = vmatpush1.bf16.msra.mxu0 0
  %894 = vmatprep.subr.bf16.mxu0 0
  %895 = vmatpush1.bf16.msra.mxu0 0
  %896 = vmatprep.mubr.bf16.mxu0 0
  %897 = vmatmul.mubr.bf16.gmra.mrb[0].mxu0 %v862
  %v898 = vpop.f32.mrb[0].mxu0
  %v899 = vadd.f32 %v848, %v898
  %v900 = vpop.f32.mrb[0].mxu0
  %v901 = vpop.f32.mrb[0].mxu0
  %v902 = vadd.f32 %v848, %v901
  %v903 = vpop.f32.mrb[0].mxu0
  %904 = vdwg.mxu0
  %905 = vst [vmem:[%s16] sm:$0xff] %v899
  %906 = vst [vmem:[%s16 + $0x8] sm:$0xff] %v902
  // Predicated region
  $region66: #{dexgan_forward.1} parent=0 // pred_check
    _
  $region67: #{dexgan_forward.1} parent=0 // pred_check_branch
    %908 = sbr.rel (0) target = $region69
  $region68: #{dexgan_forward.1} parent=0 // pred_region
    _
  $region69: #{dexgan_forward.1} parent=0 // pred_fallthru
    _
  // Predicated region
  $region70: #{dexgan_forward.1} parent=0 // pred_check
    _
  $region71: #{dexgan_forward.1} parent=0 // pred_check_branch
    %910 = sbr.rel (0) target = $region73
  $region72: #{dexgan_forward.1} parent=0 // pred_region
    _
  $region73: #{dexgan_forward.1} parent=0 // pred_fallthru
    _

</llo_original>
